<compile_context>
chip_gen: v7x
topology: tpu7x:2x2x1
jax: 0.10.0
libtpu: 0.0.40
codegen_flags: <defaults>
</compile_context>

<pallas_src>
import functools

import jax
import jax.numpy as jnp
from jax.experimental import pallas as pl
from jax.experimental.pallas import tpu as pltpu

_SQRT_HALF = 0.7071067811865476


def _ffn_kernel(x_ref, w1_ref, b1_ref, w2_ref, bgb_ref, out_ref, acc_ref, *,
                eps, inv_d):
    """One (row-tile, hidden-chunk) grid step of the fused FFN."""
    k = pl.program_id(1)

    @pl.when(k == 0)
    def _():
        acc_ref[...] = jnp.zeros_like(acc_ref)

    x = x_ref[...]                                               # (tm, d_in)

    # w_1 chunk: x @ W1[:, kc] + b1[kc] — MXU in native dtype, f32 accum.
    h = jnp.dot(x, w1_ref[...], preferred_element_type=jnp.float32)
    h = h + b1_ref[...].astype(jnp.float32)                      # (tm, tk)

    # Exact erf GELU (matches torch.nn.functional.gelu's default).
    h = 0.5 * h * (1.0 + jax.lax.erf(h * _SQRT_HALF))

    # Partial w_2: gelu(..) @ W2[kc, :], accumulated in f32 scratch.
    acc_ref[...] += jnp.dot(h.astype(w2_ref.dtype), w2_ref[...],
                            preferred_element_type=jnp.float32)  # (tm, d_in)

    @pl.when(k == pl.num_programs(1) - 1)
    def _():
        bgb = bgb_ref[...].astype(jnp.float32)                   # (3, d_in)
        # Dropout (eval mode) is identity; residual add in f32.
        y = acc_ref[...] + bgb[0:1, :] + x.astype(jnp.float32)
        # LayerNorm over d_in, eps=1e-6, biased variance (PyTorch semantics).
        mean = jnp.sum(y, axis=-1, keepdims=True) * inv_d
        c = y - mean
        var = jnp.sum(c * c, axis=-1, keepdims=True) * inv_d
        yn = c * jax.lax.rsqrt(var + eps)
        out_ref[...] = (yn * bgb[1:2, :] + bgb[2:3, :]).astype(out_ref.dtype)


def _round_up(x, n):
    return ((x + n - 1) // n) * n


def _spec(shape, index_map, buffer_count=None):
    """BlockSpec with optional single/multi-buffering (guarded for API drift)."""
    if buffer_count is not None and hasattr(pl, "Buffered"):
        try:
            return pl.BlockSpec(shape, index_map,
                                pipeline_mode=pl.Buffered(buffer_count))
        except TypeError:
            pass
    return pl.BlockSpec(shape, index_map)


def _pick_hidden_tile(d_hid, tm):
    # MXU-aligned hidden chunk that divides d_hid and keeps the f32 (tm, tk)
    # GELU intermediate <= ~2 MiB (bounds vreg/VMEM pressure between matmuls).
    for tk in (2048, 1024, 512, 256, 128):
        if d_hid % tk == 0 and tm * tk * 4 <= (2 << 20):
            return tk
    return d_hid                                  # full extent (always legal)


def _vmem_bytes(tm, tk, d_in, itemsize):
    acc = tm * d_in * 4                           # f32 accumulator scratch
    x_t = 2 * tm * d_in * itemsize                # x tile (double-buffered)
    o_t = 2 * tm * d_in * itemsize                # out tile
    w1 = 2 * d_in * tk * itemsize                 # W1 chunk (<= 2 buffers)
    w2 = 2 * tk * d_in * itemsize                 # W2 chunk
    b1 = 2 * tk * itemsize
    bgb = 3 * d_in * itemsize                     # single-buffered
    return acc + x_t + o_t + w1 + w2 + b1 + bgb


def _pick_tiles(m, d_in, d_hid, itemsize, vmem_budget):
    tm = 256 if m >= 256 else _round_up(m, 8)     # fill the 256-wide MXU rows
    tk = _pick_hidden_tile(d_hid, tm)
    while tm > 8 and _vmem_bytes(tm, tk, d_in, itemsize) > vmem_budget:
        tm = max(8, tm // 2)
        tk = _pick_hidden_tile(d_hid, tm)
    return tm, tk


def positionwise_feed_forward(x, w1, b1, w2, b2, gamma, beta, *, eps=1e-6):
    """Fused FFN + residual + LayerNorm.

    x: [..., d_in]; w1: [d_in, d_hid]; w2: [d_hid, d_in]  (x @ W layout — a
    torch nn.Linear.weight is [out, in] and must be transposed by the caller).
    """
    orig_shape = x.shape
    d_in = int(orig_shape[-1])
    d_hid = int(w1.shape[1])
    m = 1
    for s in orig_shape[:-1]:
        m *= int(s)

    xf = x.reshape(m, d_in)
    b1f = b1.reshape(1, d_hid)
    # Merge the three small per-feature vectors into one operand: one tiny DMA
    # instead of three.  Row 0 = b2, row 1 = gamma, row 2 = beta.
    bgb = jnp.stack([b2.reshape(d_in), gamma.reshape(d_in), beta.reshape(d_in)])

    # Explicit scoped-VMEM limit (default is only ~16/32 MiB) with headroom
    # below physical VMEM (64 MiB per TC on v7x).
    try:
        vmem_cap = int(pltpu.get_tpu_info().vmem_capacity_bytes)
    except Exception:
        vmem_cap = 64 * 1024 * 1024
    vmem_limit = int(min(vmem_cap * 7 // 8, 100 * 1024 * 1024))

    itemsize = int(jnp.dtype(x.dtype).itemsize)
    tm, tk = _pick_tiles(m, d_in, d_hid, itemsize, (vmem_limit * 3) // 4)

    # Ceil-div row grid with a zero-padded tail tile (padded rows are sliced
    # off after the call; LayerNorm of an all-zero row is well-defined, eps>0).
    m_pad = _round_up(m, tm)
    if m_pad != m:
        xf = jnp.pad(xf, ((0, m_pad - m), (0, 0)))
    n_rows = m_pad // tm
    n_k = d_hid // tk                              # tk divides or equals d_hid

    # Single-buffer blocks whose index never changes across the grid; weight
    # chunks keep default double-buffering when they move along k.
    w_buf = 1 if n_k == 1 else None

    kernel = functools.partial(_ffn_kernel, eps=float(eps), inv_d=1.0 / d_in)

    cost = pl.CostEstimate(
        flops=4 * m_pad * d_in * d_hid,            # two matmuls
        transcendentals=m_pad * d_hid,             # erf
        bytes_accessed=(2 * m * d_in + 2 * d_in * d_hid + d_hid + 3 * d_in)
        * itemsize,
    )

    out = pl.pallas_call(
        kernel,
        out_shape=jax.ShapeDtypeStruct((m_pad, d_in), x.dtype),
        grid_spec=pltpu.PrefetchScalarGridSpec(
            num_scalar_prefetch=0,
            grid=(n_rows, n_k),
            in_specs=[
                _spec((tm, d_in), lambda i, k: (i, 0)),            # x rows
                _spec((d_in, tk), lambda i, k: (0, k), w_buf),     # W1 chunk
                _spec((1, tk), lambda i, k: (0, k), w_buf),        # b1 chunk
                _spec((tk, d_in), lambda i, k: (k, 0), w_buf),     # W2 chunk
                _spec((3, d_in), lambda i, k: (0, 0), 1),          # b2/gamma/beta
            ],
            out_specs=pl.BlockSpec((tm, d_in), lambda i, k: (i, 0)),
            scratch_shapes=[pltpu.VMEM((tm, d_in), jnp.float32)],
        ),
        compiler_params=pltpu.CompilerParams(
            dimension_semantics=("parallel", "arbitrary"),
            vmem_limit_bytes=vmem_limit,
        ),
        cost_estimate=cost,
    )(xf, w1, b1f, w2, bgb)

    if m_pad != m:
        out = out[:m]
    return out.reshape(orig_shape)


def _reference(x, w1, b1, w2, b2, gamma, beta, eps=1e-6):
    h = jax.nn.gelu(x @ w1 + b1, approximate=False)
    y = h @ w2 + b2 + x                      # dropout is identity in eval mode
    mean = jnp.mean(y, axis=-1, keepdims=True)
    var = jnp.mean((y - mean) ** 2, axis=-1, keepdims=True)
    return (y - mean) * jax.lax.rsqrt(var + eps) * gamma + beta


if __name__ == "__main__":
    # Small shapes consistent with the module: batch=2, seq=8, d_in=32, d_hid=64
    B, S, d_in, d_hid = 2, 8, 32, 64

    key = jax.random.PRNGKey(0)
    kx, k1, kb1, k2, kb2, kg, kb = jax.random.split(key, 7)
    x = jax.random.normal(kx, (B, S, d_in), dtype=jnp.float32)
    w1 = 0.1 * jax.random.normal(k1, (d_in, d_hid), dtype=jnp.float32)
    b1 = 0.1 * jax.random.normal(kb1, (d_hid,), dtype=jnp.float32)
    w2 = 0.1 * jax.random.normal(k2, (d_hid, d_in), dtype=jnp.float32)
    b2 = 0.1 * jax.random.normal(kb2, (d_in,), dtype=jnp.float32)
    gamma = 1.0 + 0.1 * jax.random.normal(kg, (d_in,), dtype=jnp.float32)
    beta = 0.1 * jax.random.normal(kb, (d_in,), dtype=jnp.float32)

    out = positionwise_feed_forward(x, w1, b1, w2, b2, gamma, beta)
    out = jax.block_until_ready(out)

    ref = _reference(x, w1, b1, w2, b2, gamma, beta)
    max_err = float(jnp.max(jnp.abs(out - ref)))
    assert jnp.allclose(out, ref, atol=1e-4, rtol=1e-4), max_err

    print("KERNEL_OK")
</pallas_src>

<mosaic_0001>
module attributes {stable_mosaic.version = 11 : i64} {
  func.func @_ffn_kernel(%arg0: i32, %arg1: i32, %arg2: memref<16x32xf32, #tpu.memory_space<vmem>>, %arg3: memref<32x64xf32, #tpu.memory_space<vmem>>, %arg4: memref<1x64xf32, #tpu.memory_space<vmem>>, %arg5: memref<64x32xf32, #tpu.memory_space<vmem>>, %arg6: memref<3x32xf32, #tpu.memory_space<vmem>>, %arg7: memref<16x32xf32, #tpu.memory_space<vmem>>, %arg8: memref<16x32xf32, #tpu.memory_space<vmem>>) attributes {dimension_semantics = [#tpu.dimension_semantics<parallel>, #tpu.dimension_semantics<arbitrary>], iteration_bounds = array<i64: 1, 1>, scalar_prefetch = 0 : i64, scratch_operands = 1 : i64, tpu.core_type = #tpu.core_type<tc>, window_params = [{transform_indices = @transform_0, window_bounds = array<i64: 16, 32>}, {pipeline_mode = #tpu.pipeline_mode<synchronous>, transform_indices = @transform_1, window_bounds = array<i64: 32, 64>}, {pipeline_mode = #tpu.pipeline_mode<synchronous>, transform_indices = @transform_2, window_bounds = array<i64: 1, 64>}, {pipeline_mode = #tpu.pipeline_mode<synchronous>, transform_indices = @transform_3, window_bounds = array<i64: 64, 32>}, {pipeline_mode = #tpu.pipeline_mode<synchronous>, transform_indices = @transform_4, window_bounds = array<i64: 3, 32>}, {transform_indices = @transform_5, window_bounds = array<i64: 16, 32>}]} {
    %c0_i32 = arith.constant 0 : i32
    %0 = arith.cmpi eq, %arg1, %c0_i32 : i32
    %1 = arith.extui %0 : i1 to i32
    %c0_i32_0 = arith.constant 0 : i32
    %2 = arith.cmpi ne, %1, %c0_i32_0 : i32
    scf.if %2 {
      %cst_18 = arith.constant 0.000000e+00 : f32
      %25 = vector.broadcast %cst_18 : f32 to vector<16x32xf32>
      %c0_19 = arith.constant 0 : index
      %c0_20 = arith.constant 0 : index
      %26 = vector.load %arg8[%c0_19, %c0_20] : memref<16x32xf32, #tpu.memory_space<vmem>>, vector<16x32xf32>
      tpu.vector_store %arg8[%c0_19, %c0_20], %25 {strides = array<i32>} : memref<16x32xf32, #tpu.memory_space<vmem>>, vector<16x32xf32>,
    } else {
    }
    %c0 = arith.constant 0 : index
    %c0_1 = arith.constant 0 : index
    %3 = vector.load %arg2[%c0, %c0_1] : memref<16x32xf32, #tpu.memory_space<vmem>>, vector<16x32xf32>
    %c0_2 = arith.constant 0 : index
    %c0_3 = arith.constant 0 : index
    %4 = vector.load %arg3[%c0_2, %c0_3] : memref<32x64xf32, #tpu.memory_space<vmem>>, vector<32x64xf32>
    %cst = arith.constant dense<0.000000e+00> : vector<16x64xf32>
    %5 = tpu.matmul %3, %4, %cst {dimension_numbers = #tpu.dot_dimension_numbers<[1], [0], [0], [1], [0, 0, 1, 1], [], []>} : vector<16x32xf32>, vector<32x64xf32>, vector<16x64xf32> -> vector<16x64xf32>
    %c0_4 = arith.constant 0 : index
    %c0_5 = arith.constant 0 : index
    %6 = vector.load %arg4[%c0_4, %c0_5] : memref<1x64xf32, #tpu.memory_space<vmem>>, vector<1x64xf32>
    %7 = vector.broadcast %6 : vector<1x64xf32> to vector<16x64xf32>
    %8 = arith.addf %5, %7 : vector<16x64xf32>
    %cst_6 = arith.constant 5.000000e-01 : f32
    %9 = vector.broadcast %cst_6 : f32 to vector<16x64xf32>
    %10 = arith.mulf %9, %8 : vector<16x64xf32>
    %cst_7 = arith.constant 0.707106769 : f32
    %11 = vector.broadcast %cst_7 : f32 to vector<16x64xf32>
    %12 = arith.mulf %8, %11 : vector<16x64xf32>
    %13 = math.erf %12 : vector<16x64xf32>
    %cst_8 = arith.constant 1.000000e+00 : f32
    %14 = vector.broadcast %cst_8 : f32 to vector<16x64xf32>
    %15 = arith.addf %14, %13 : vector<16x64xf32>
    %16 = arith.mulf %10, %15 : vector<16x64xf32>
    %c0_9 = arith.constant 0 : index
    %c0_10 = arith.constant 0 : index
    %17 = vector.load %arg8[%c0_9, %c0_10] : memref<16x32xf32, #tpu.memory_space<vmem>>, vector<16x32xf32>
    %c0_11 = arith.constant 0 : index
    %c0_12 = arith.constant 0 : index
    %18 = vector.load %arg5[%c0_11, %c0_12] : memref<64x32xf32, #tpu.memory_space<vmem>>, vector<64x32xf32>
    %cst_13 = arith.constant dense<0.000000e+00> : vector<16x32xf32>
    %19 = tpu.matmul %16, %18, %cst_13 {dimension_numbers = #tpu.dot_dimension_numbers<[1], [0], [0], [1], [0, 0, 1, 1], [], []>} : vector<16x64xf32>, vector<64x32xf32>, vector<16x32xf32> -> vector<16x32xf32>
    %20 = arith.addf %17, %19 : vector<16x32xf32>
    %c0_14 = arith.constant 0 : index
    %c0_15 = arith.constant 0 : index
    %21 = vector.load %arg8[%c0_14, %c0_15] : memref<16x32xf32, #tpu.memory_space<vmem>>, vector<16x32xf32>
    tpu.vector_store %arg8[%c0_14, %c0_15], %20 {strides = array<i32>} : memref<16x32xf32, #tpu.memory_space<vmem>>, vector<16x32xf32>,
    %c0_i32_16 = arith.constant 0 : i32
    %22 = arith.cmpi eq, %arg1, %c0_i32_16 : i32
    %23 = arith.extui %22 : i1 to i32
    %c0_i32_17 = arith.constant 0 : i32
    %24 = arith.cmpi ne, %23, %c0_i32_17 : i32
    scf.if %24 {
      %c0_18 = arith.constant 0 : index
      %c0_19 = arith.constant 0 : index
      %25 = vector.load %arg6[%c0_18, %c0_19] : memref<3x32xf32, #tpu.memory_space<vmem>>, vector<3x32xf32>
      %c0_20 = arith.constant 0 : index
      %c0_21 = arith.constant 0 : index
      %26 = vector.load %arg8[%c0_20, %c0_21] : memref<16x32xf32, #tpu.memory_space<vmem>>, vector<16x32xf32>
      %27 = vector.extract_strided_slice %25 {offsets = [0, 0], sizes = [1, 32], strides = [1, 1]} : vector<3x32xf32> to vector<1x32xf32>
      %28 = vector.broadcast %27 : vector<1x32xf32> to vector<16x32xf32>
      %29 = arith.addf %26, %28 : vector<16x32xf32>
      %30 = arith.addf %29, %3 : vector<16x32xf32>
      %cst_22 = arith.constant dense<0.000000e+00> : vector<16xf32>
      %31 = vector.multi_reduction <add>, %30, %cst_22 [1] : vector<16x32xf32> to vector<16xf32>
      %32 = vector.shape_cast %31 : vector<16xf32> to vector<16x1xf32>
      %cst_23 = arith.constant 3.125000e-02 : f32
      %33 = vector.broadcast %cst_23 : f32 to vector<16x1xf32>
      %34 = arith.mulf %32, %33 : vector<16x1xf32>
      %35 = vector.broadcast %34 : vector<16x1xf32> to vector<16x32xf32>
      %36 = arith.subf %30, %35 : vector<16x32xf32>
      %37 = arith.mulf %36, %36 : vector<16x32xf32>
      %cst_24 = arith.constant dense<0.000000e+00> : vector<16xf32>
      %38 = vector.multi_reduction <add>, %37, %cst_24 [1] : vector<16x32xf32> to vector<16xf32>
      %39 = vector.shape_cast %38 : vector<16xf32> to vector<16x1xf32>
      %cst_25 = arith.constant 3.125000e-02 : f32
      %40 = vector.broadcast %cst_25 : f32 to vector<16x1xf32>
      %41 = arith.mulf %39, %40 : vector<16x1xf32>
      %cst_26 = arith.constant 9.99999997E-7 : f32
      %42 = vector.broadcast %cst_26 : f32 to vector<16x1xf32>
      %43 = arith.addf %41, %42 : vector<16x1xf32>
      %44 = math.rsqrt %43 : vector<16x1xf32>
      %45 = vector.broadcast %44 : vector<16x1xf32> to vector<16x32xf32>
      %46 = arith.mulf %36, %45 : vector<16x32xf32>
      %47 = vector.extract_strided_slice %25 {offsets = [1, 0], sizes = [1, 32], strides = [1, 1]} : vector<3x32xf32> to vector<1x32xf32>
      %48 = vector.broadcast %47 : vector<1x32xf32> to vector<16x32xf32>
      %49 = arith.mulf %46, %48 : vector<16x32xf32>
      %50 = vector.extract_strided_slice %25 {offsets = [2, 0], sizes = [1, 32], strides = [1, 1]} : vector<3x32xf32> to vector<1x32xf32>
      %51 = vector.broadcast %50 : vector<1x32xf32> to vector<16x32xf32>
      %52 = arith.addf %49, %51 : vector<16x32xf32>
      %c0_27 = arith.constant 0 : index
      %c0_28 = arith.constant 0 : index
      %53 = vector.load %arg7[%c0_27, %c0_28] : memref<16x32xf32, #tpu.memory_space<vmem>>, vector<16x32xf32>
      tpu.vector_store %arg7[%c0_27, %c0_28], %52 {strides = array<i32>} : memref<16x32xf32, #tpu.memory_space<vmem>>, vector<16x32xf32>,
    } else {
    }
    return
  }
  func.func @transform_0(%arg0: i32, %arg1: i32) -> (i32, i32) {
    %c0_i32 = arith.constant 0 : i32
    %c0_i32_0 = arith.constant 0 : i32
    return %arg0, %c0_i32 : i32, i32
  }
  func.func @transform_1(%arg0: i32, %arg1: i32) -> (i32, i32) {
    %c0_i32 = arith.constant 0 : i32
    %c0_i32_0 = arith.constant 0 : i32
    return %c0_i32, %arg1 : i32, i32
  }
  func.func @transform_2(%arg0: i32, %arg1: i32) -> (i32, i32) {
    %c0_i32 = arith.constant 0 : i32
    %c0_i32_0 = arith.constant 0 : i32
    return %c0_i32, %arg1 : i32, i32
  }
  func.func @transform_3(%arg0: i32, %arg1: i32) -> (i32, i32) {
    %c0_i32 = arith.constant 0 : i32
    %c0_i32_0 = arith.constant 0 : i32
    return %arg1, %c0_i32 : i32, i32
  }
  func.func @transform_4(%arg0: i32, %arg1: i32) -> (i32, i32) {
    %c0_i32 = arith.constant 0 : i32
    %c0_i32_0 = arith.constant 0 : i32
    %c0_i32_1 = arith.constant 0 : i32
    return %c0_i32, %c0_i32_0 : i32, i32
  }
  func.func @transform_5(%arg0: i32, %arg1: i32) -> (i32, i32) {
    %c0_i32 = arith.constant 0 : i32
    %c0_i32_0 = arith.constant 0 : i32
    return %arg0, %c0_i32 : i32, i32
  }
}

</mosaic_0001>

<llo_original>
// kernel: tpu_custom_call.1
$region0: #{tpu_custom_call.1}
  #allocation0 [shape = 'u32[]', space=smem, size = 0x4, offset = 0x4, fixed_abs, tag = 'smem constant byte address 0x4 - core index']
  #allocation1 [shape = 'u32[144,128]{1,0:T(1,128)}', space=vmem, size = 0x12000, scoped, tag = 'internal scratch']
  #allocation2 [shape = 'f32[16,32]{1,0:T(8,128)}', space=vmem, size = 0x2000, scoped, tag = 'scratch operand']
  %s0 = inlined_call_operand.vmem [shape: f32[16,32], index: 0, kind: input, shape index: {}]
  %s1 = inlined_call_operand.vmem [shape: f32[32,64], index: 1, kind: input, shape index: {}]
  %s2 = inlined_call_operand.vmem [shape: f32[1,64], index: 2, kind: input, shape index: {}]
  %s3 = inlined_call_operand.vmem [shape: f32[64,32], index: 3, kind: input, shape index: {}]
  %s4 = inlined_call_operand.vmem [shape: f32[3,32], index: 4, kind: input, shape index: {}]
  %s5 = inlined_call_operand.hbm [shape: f32[16,32], index: 5, kind: output, shape index: {}]
  %s6 = sld [smem:[#allocation0]]
  $region38: #{tpu_custom_call.1} parent=0
    _
  %s8 = ssub.s32 1, %s6
  %s9 = scalar_select 0, %s8, %s6
  $region1: #{tpu_custom_call.1} parent=0
    #allocation3 [shape = 'u8[8192]{0}', space=vmem, size = 0x2000, scoped, tag = 'output window, operand 0, single buffered']
    #allocation4 [shape = 's32[1]{0}', space=sflag, size = 0x4, scoped, tag = 'scoped memory for tpu_custom_call.1']
    %10 = vsyncpa [#allocation4], 0
    // Predicated region
    $region2: #{tpu_custom_call.1} parent=1 // pred_check
      _
    $region3: #{tpu_custom_call.1} parent=1 // pred_check_branch
      %12 = sbr.rel (0) target = $region5
    $region4: #{tpu_custom_call.1} parent=1 // pred_region
      _
    $region5: #{tpu_custom_call.1} parent=1 // pred_fallthru
      _
    // Predicated region
    $region6: #{tpu_custom_call.1} parent=1 // pred_check
      _
    $region7: #{tpu_custom_call.1} parent=1 // pred_check_branch
      %14 = sbr.rel (0) target = $region9
    $region8: #{tpu_custom_call.1} parent=1 // pred_region
      _
    $region9: #{tpu_custom_call.1} parent=1 // pred_fallthru
      _
    // Predicated region
    $region10: #{tpu_custom_call.1} parent=1 // pred_check
      _
    $region11: #{tpu_custom_call.1} parent=1 // pred_check_branch
      %16 = sbr.rel (0) target = $region13
    $region12: #{tpu_custom_call.1} parent=1 // pred_region
      _
    $region13: #{tpu_custom_call.1} parent=1 // pred_fallthru
      _
    // Predicated region
    $region14: #{tpu_custom_call.1} parent=1 // pred_check
      _
    $region15: #{tpu_custom_call.1} parent=1 // pred_check_branch
      %18 = sbr.rel (0) target = $region17
    $region16: #{tpu_custom_call.1} parent=1 // pred_region
      _
    $region17: #{tpu_custom_call.1} parent=1 // pred_fallthru
      _
    // Predicated region
    $region18: #{tpu_custom_call.1} parent=1 // pred_check
      _
    $region19: #{tpu_custom_call.1} parent=1 // pred_check_branch
      %20 = sbr.rel (0) target = $region21
    $region20: #{tpu_custom_call.1} parent=1 // pred_region
      _
    $region21: #{tpu_custom_call.1} parent=1 // pred_fallthru
      _
    %p21 = scmp.eq.s32.totalorder 0, 0
    // Predicated region
    $region22: #{tpu_custom_call.1} parent=1 // pred_check
      %p22 = pneg %p21
    $region23: #{tpu_custom_call.1} parent=1 // pred_check_branch
      %24 = sbr.rel (%p22) target = $region25
    $region24: #{tpu_custom_call.1} parent=1 // pred_region
      %vm25 = vcmask 261120
      %26 = vst.msk [vmem:[#allocation2] sm:$0xff] %vm25, 0.0
      %27 = vst.msk [vmem:[#allocation2 + $0x8] sm:$0xff] %vm25, 0.0
    $region25: #{tpu_custom_call.1} parent=1 // pred_fallthru
      _
    %v28 = vld [vmem:[%s0] sm:$0xff]
    %v29 = vld [vmem:[%s0 + $0x8] sm:$0xff]
    %v30 = vld [vmem:[%s1] sm:$0xff]
    %v31 = vld [vmem:[%s1 + $0x8] sm:$0xff]
    %v32 = vld [vmem:[%s1 + $0x10] sm:$0xff]
    %v33 = vld [vmem:[%s1 + $0x18] sm:$0xff]
    %v34 = vld [vmem:[%s2] sm:$0x1]
    %v36 = vlaneseq
    %v37 = vshrl.u32 %v36, 7
    %v38 = vsub.s32 0, %v37
    %v39 = vrot.slane %v34, %v38
    %vm41 = vcmask 261120
    %v43 = vsel %vm41, %v28, 0
    %v46 = vsel %vm41, %v29, 0
    %48 = vmatprep.subr.mxu0 0.0
    %49 = vmatpush1.msra.mxu0 %v30
    %50 = vmatprep.subr.mxu0 0.0
    %51 = vmatpush1.msra.mxu0 %v31
    %52 = vmatprep.subr.mxu0 0.0
    %53 = vmatpush1.msra.mxu0 %v32
    %54 = vmatprep.subr.mxu0 0.0
    %55 = vmatpush1.msra.mxu0 %v33
    %56 = vmatprep.subr.mxu0 0.0
    %57 = vmatpush1.msra.mxu0 0.0
    %58 = vmatprep.subr.mxu0 0.0
    %59 = vmatpush1.msra.mxu0 0.0
    %60 = vmatprep.subr.mxu0 0.0
    %61 = vmatpush1.msra.mxu0 0.0
    %62 = vmatprep.subr.mxu0 0.0
    %63 = vmatpush1.msra.mxu0 0.0
    %64 = vmatprep.subr.mxu0 0.0
    %65 = vmatpush1.msra.mxu0 0.0
    %66 = vmatprep.subr.mxu0 0.0
    %67 = vmatpush1.msra.mxu0 0.0
    %68 = vmatprep.subr.mxu0 0.0
    %69 = vmatpush1.msra.mxu0 0.0
    %70 = vmatprep.subr.mxu0 0.0
    %71 = vmatpush1.msra.mxu0 0.0
    %72 = vmatprep.subr.mxu0 0.0
    %73 = vmatpush1.msra.mxu0 0.0
    %74 = vmatprep.subr.mxu0 0.0
    %75 = vmatpush1.msra.mxu0 0.0
    %76 = vmatprep.subr.mxu0 0.0
    %77 = vmatpush1.msra.mxu0 0.0
    %78 = vmatprep.subr.mxu0 0.0
    %79 = vmatpush1.msra.mxu0 0.0
    %80 = vmatprep.subr.mxu0 0.0
    %81 = vmatpush1.msra.mxu0 0.0
    %82 = vmatprep.subr.mxu0 0.0
    %83 = vmatpush1.msra.mxu0 0.0
    %84 = vmatprep.subr.mxu0 0.0
    %85 = vmatpush1.msra.mxu0 0.0
    %86 = vmatprep.subr.mxu0 0.0
    %87 = vmatpush1.msra.mxu0 0.0
    %88 = vmatprep.subr.mxu0 0.0
    %89 = vmatpush1.msra.mxu0 0.0
    %90 = vmatprep.subr.mxu0 0.0
    %91 = vmatpush1.msra.mxu0 0.0
    %92 = vmatprep.subr.mxu0 0.0
    %93 = vmatpush1.msra.mxu0 0.0
    %94 = vmatprep.subr.mxu0 0.0
    %95 = vmatpush1.msra.mxu0 0.0
    %96 = vmatprep.subr.mxu0 0.0
    %97 = vmatpush1.msra.mxu0 0.0
    %98 = vmatprep.subr.mxu0 0.0
    %99 = vmatpush1.msra.mxu0 0.0
    %100 = vmatprep.subr.mxu0 0.0
    %101 = vmatpush1.msra.mxu0 0.0
    %102 = vmatprep.subr.mxu0 0.0
    %103 = vmatpush1.msra.mxu0 0.0
    %104 = vmatprep.subr.mxu0 0.0
    %105 = vmatpush1.msra.mxu0 0.0
    %106 = vmatprep.subr.mxu0 0.0
    %107 = vmatpush1.msra.mxu0 0.0
    %108 = vmatprep.subr.mxu0 0.0
    %109 = vmatpush1.msra.mxu0 0.0
    %110 = vmatprep.subr.mxu0 0.0
    %111 = vmatpush1.msra.mxu0 0.0
    %112 = vmatprep.mubr.f32.mxu0 0.0
    %113 = vmatmul.mubr.f32.gmra.mrb[0].mxu0 %v43
    %v114 = vpop.f32.mrb[0].mxu0
    %v115 = vadd.f32 %v39, %v114
    %v116 = vpop.f32.mrb[0].mxu0
    %117 = vmatprep.mubr.f32.mxu0 0.0
    %118 = vmatmul.mubr.f32.gmra.mrb[0].mxu0 %v46
    %v119 = vpop.f32.mrb[0].mxu0
    %v120 = vadd.f32 %v39, %v119
    %v121 = vpop.f32.mrb[0].mxu0
    %122 = vdwg.mxu0
    %v123 = vmul.f32 %v115, 0.5
    %v124 = vmul.f32 %v120, 0.5
    %v125 = vmul.f32 %v115, 0.70710677
    %v126 = vmul.f32 %v120, 0.70710677
    %v127 = verf.f32.pop %v125
    %v128 = verf.f32.pop %v126
    %v129 = vadd.f32 %v127, 1.0
    %v130 = vadd.f32 %v128, 1.0
    %v131 = vmul.f32 %v123, %v129
    %v132 = vmul.f32 %v124, %v130
    %v133 = vld [vmem:[#allocation2] sm:$0xff]
    %v134 = vld [vmem:[#allocation2 + $0x8] sm:$0xff]
    %v135 = vld [vmem:[%s3] sm:$0xff]
    %v136 = vld [vmem:[%s3 + $0x8] sm:$0xff]
    %v137 = vld [vmem:[%s3 + $0x10] sm:$0xff]
    %v138 = vld [vmem:[%s3 + $0x18] sm:$0xff]
    %v139 = vld [vmem:[%s3 + $0x20] sm:$0xff]
    %v140 = vld [vmem:[%s3 + $0x28] sm:$0xff]
    %v141 = vld [vmem:[%s3 + $0x30] sm:$0xff]
    %v142 = vld [vmem:[%s3 + $0x38] sm:$0xff]
    %vm143 = vcmask 523264
    %v145 = vsel %vm143, %v131, 0
    %v148 = vsel %vm143, %v132, 0
    %150 = vmatprep.subr.mxu0 0.0
    %151 = vmatpush1.msra.mxu0 %v135
    %152 = vmatprep.subr.mxu0 0.0
    %153 = vmatpush1.msra.mxu0 %v136
    %154 = vmatprep.subr.mxu0 0.0
    %155 = vmatpush1.msra.mxu0 %v137
    %156 = vmatprep.subr.mxu0 0.0
    %157 = vmatpush1.msra.mxu0 %v138
    %158 = vmatprep.subr.mxu0 0.0
    %159 = vmatpush1.msra.mxu0 %v139
    %160 = vmatprep.subr.mxu0 0.0
    %161 = vmatpush1.msra.mxu0 %v140
    %162 = vmatprep.subr.mxu0 0.0
    %163 = vmatpush1.msra.mxu0 %v141
    %164 = vmatprep.subr.mxu0 0.0
    %165 = vmatpush1.msra.mxu0 %v142
    %166 = vmatprep.subr.mxu0 0.0
    %167 = vmatpush1.msra.mxu0 0.0
    %168 = vmatprep.subr.mxu0 0.0
    %169 = vmatpush1.msra.mxu0 0.0
    %170 = vmatprep.subr.mxu0 0.0
    %171 = vmatpush1.msra.mxu0 0.0
    %172 = vmatprep.subr.mxu0 0.0
    %173 = vmatpush1.msra.mxu0 0.0
    %174 = vmatprep.subr.mxu0 0.0
    %175 = vmatpush1.msra.mxu0 0.0
    %176 = vmatprep.subr.mxu0 0.0
    %177 = vmatpush1.msra.mxu0 0.0
    %178 = vmatprep.subr.mxu0 0.0
    %179 = vmatpush1.msra.mxu0 0.0
    %180 = vmatprep.subr.mxu0 0.0
    %181 = vmatpush1.msra.mxu0 0.0
    %182 = vmatprep.subr.mxu0 0.0
    %183 = vmatpush1.msra.mxu0 0.0
    %184 = vmatprep.subr.mxu0 0.0
    %185 = vmatpush1.msra.mxu0 0.0
    %186 = vmatprep.subr.mxu0 0.0
    %187 = vmatpush1.msra.mxu0 0.0
    %188 = vmatprep.subr.mxu0 0.0
    %189 = vmatpush1.msra.mxu0 0.0
    %190 = vmatprep.subr.mxu0 0.0
    %191 = vmatpush1.msra.mxu0 0.0
    %192 = vmatprep.subr.mxu0 0.0
    %193 = vmatpush1.msra.mxu0 0.0
    %194 = vmatprep.subr.mxu0 0.0
    %195 = vmatpush1.msra.mxu0 0.0
    %196 = vmatprep.subr.mxu0 0.0
    %197 = vmatpush1.msra.mxu0 0.0
    %198 = vmatprep.subr.mxu0 0.0
    %199 = vmatpush1.msra.mxu0 0.0
    %200 = vmatprep.subr.mxu0 0.0
    %201 = vmatpush1.msra.mxu0 0.0
    %202 = vmatprep.subr.mxu0 0.0
    %203 = vmatpush1.msra.mxu0 0.0
    %204 = vmatprep.subr.mxu0 0.0
    %205 = vmatpush1.msra.mxu0 0.0
    %206 = vmatprep.subr.mxu0 0.0
    %207 = vmatpush1.msra.mxu0 0.0
    %208 = vmatprep.subr.mxu0 0.0
    %209 = vmatpush1.msra.mxu0 0.0
    %210 = vmatprep.subr.mxu0 0.0
    %211 = vmatpush1.msra.mxu0 0.0
    %212 = vmatprep.subr.mxu0 0.0
    %213 = vmatpush1.msra.mxu0 0.0
    %214 = vmatprep.mubr.f32.mxu0 0.0
    %215 = vmatmul.mubr.f32.gmra.mrb[0].mxu0 %v145
    %v216 = vpop.f32.mrb[0].mxu0
    %v217 = vadd.f32 0.0, %v216
    %v218 = vpop.f32.mrb[0].mxu0
    %219 = vmatprep.mubr.f32.mxu0 0.0
    %220 = vmatmul.mubr.f32.gmra.mrb[0].mxu0 %v148
    %v221 = vpop.f32.mrb[0].mxu0
    %v222 = vadd.f32 0.0, %v221
    %v223 = vpop.f32.mrb[0].mxu0
    %224 = vdwg.mxu0
    %v225 = vadd.f32 %v133, %v217
    %v226 = vadd.f32 %v134, %v222
    %227 = vst.msk [vmem:[#allocation2] sm:$0xff] %vm41, %v225
    %228 = vst.msk [vmem:[#allocation2 + $0x8] sm:$0xff] %vm41, %v226
    // Predicated region
    $region26: #{tpu_custom_call.1} parent=1 // pred_check
      %p229 = pneg %p21
    $region27: #{tpu_custom_call.1} parent=1 // pred_check_branch
      %231 = sbr.rel (%p229) target = $region29
    $region28: #{tpu_custom_call.1} parent=1 // pred_region
      %v232 = vld [vmem:[%s4] sm:$0x7]
      %v233 = vld [vmem:[#allocation2] sm:$0xff]
      %v234 = vld [vmem:[#allocation2 + $0x8] sm:$0xff]
      %v235 = vlaneseq
      %v236 = vshrl.u32 %v235, 7
      %v237 = vsub.s32 0, %v236
      %v238 = vrot.slane %v232, %v237
      %v239 = vadd.f32 %v233, %v238
      %v240 = vadd.f32 %v234, %v238
      %v241 = vadd.f32 %v239, %v28
      %v242 = vadd.f32 %v240, %v29
      %v243 = vsel %vm41, %v241, 0.0
      %244 = vadd.xlane.f32.xlu0 %v243
      %v245 = vpop.xlane.xlu0 %244
      %v246 = vsel %vm41, %v242, 0.0
      %247 = vadd.xlane.f32.xlu0 %v246
      %v248 = vpop.xlane.xlu0 %247
      %v249 = vmul.f32 %v245, 0.03125
      %v250 = vmul.f32 %v248, 0.03125
      %v251 = vsub.f32 %v241, %v249
      %v252 = vsub.f32 %v242, %v250
      %v253 = vmul.f32 %v251, %v251
      %v254 = vmul.f32 %v252, %v252
      %v255 = vsel %vm41, %v253, 0.0
      %256 = vadd.xlane.f32.xlu0 %v255
      %v257 = vpop.xlane.xlu0 %256
      %v258 = vsel %vm41, %v254, 0.0
      %259 = vadd.xlane.f32.xlu0 %v258
      %v260 = vpop.xlane.xlu0 %259
      %v261 = vmul.f32 %v257, 0.03125
      %v262 = vmul.f32 %v260, 0.03125
      %v263 = vadd.f32 %v261, 1e-06
      %v264 = vadd.f32 %v262, 1e-06
      %v265 = vrsqrt.pop %v263
      %v266 = vrsqrt.pop %v264
      %v267 = vmul.f32 %v251, %v265
      %v268 = vmul.f32 %v252, %v266
      %v269 = vlaneseq
      %v270 = vshrl.u32 %v269, 7
      %v271 = vsub.s32 1, %v270
      %v272 = vrot.slane %v232, %v271
      %v273 = vmul.f32 %v267, %v272
      %v274 = vmul.f32 %v268, %v272
      %v275 = vlaneseq
      %v276 = vshrl.u32 %v275, 7
      %v277 = vsub.s32 2, %v276
      %v278 = vrot.slane %v232, %v277
      %v279 = vadd.f32 %v273, %v278
      %v280 = vadd.f32 %v274, %v278
      %281 = vst.msk [vmem:[#allocation3] sm:$0xff] %vm41, %v279
      %282 = vst.msk [vmem:[#allocation3 + $0x8] sm:$0xff] %vm41, %v280
    $region29: #{tpu_custom_call.1} parent=1 // pred_fallthru
      _
    // Predicated region
    $region30: #{tpu_custom_call.1} parent=1 // pred_check
      _
    $region31: #{tpu_custom_call.1} parent=1 // pred_check_branch
      %284 = sbr.rel (0) target = $region33
    $region32: #{tpu_custom_call.1} parent=1 // pred_region
      %s286 = ssub.s32 256, 256
      %287 = vsyncadd [#allocation4], %s286
      %s288 = sshll.u32 [#allocation3], 4
      %s289 = int_to_ptr.vmem [resolvable:$true] %s288
      %294 = dma.vmem_to_hbm [thread:$0]  %s289, 256, %s5, [#allocation4], 128, 128, 8
    $region33: #{tpu_custom_call.1} parent=1 // pred_fallthru
      _
    // Predicated region
    $region34: #{tpu_custom_call.1} parent=1 // pred_check
      _
    $region35: #{tpu_custom_call.1} parent=1 // pred_check_branch
      %296 = sbr.rel (0) target = $region37
    $region36: #{tpu_custom_call.1} parent=1 // pred_region
      %297 = dma.done [#allocation4], 256
    $region37: #{tpu_custom_call.1} parent=1 // pred_fallthru
      _
    %298 = vsyncpa [#allocation4], 1

</llo_original>
